<compile_context>
chip_gen: v6e
topology: v6e:2x2x1
jax: 0.10.0
libtpu: 0.0.40
codegen_flags: <defaults>
</compile_context>

<pallas_src>
import math

import jax
import jax.numpy as jnp
from jax.experimental import pallas as pl
from jax.experimental.pallas import tpu as pltpu

PREKAPPA0 = 16.0


def latlon_to_cart(lat_deg, lon_deg):
    """Degrees lat/lon -> unit vectors on S^2, shape (..., 3)."""
    lat = jnp.deg2rad(lat_deg)
    lon = jnp.deg2rad(lon_deg)
    return jnp.stack(
        [jnp.cos(lat) * jnp.cos(lon), jnp.cos(lat) * jnp.sin(lon), jnp.sin(lat)],
        axis=-1,
    )


def _round_up(x, m):
    return ((x + m - 1) // m) * m


def _mvmf_kernel(feat_ref, lx_ref, ly_ref, lz_ref,
                 w_ref, b_ref, mux_ref, muy_ref, muz_ref, nhk_ref, coeff_ref,
                 mw_ref, probs_ref):
    # ---- mixture-weight head: bf16 MXU matmul (f32 accumulate) + f32 softmax ----
    logits = jnp.dot(feat_ref[...].astype(jnp.bfloat16), w_ref[...],
                     preferred_element_type=jnp.float32) + b_ref[...]        # (TB, M)
    m = jnp.max(logits, axis=1, keepdims=True)
    e = jnp.exp(logits - m)
    denom = jnp.sum(e, axis=1, keepdims=True)
    inv = pl.reciprocal(denom)               # exact: mixture_weights is an output
    mw = e * inv                                                             # (TB, M)
    mw_ref[...] = mw

    # ---- vMF densities via squared chordal distance (pure VPU, no MXU) ----
    # kappa*(dot - 1) = nhk * ||label - mu||^2 with nhk = -0.5*kappa (<= 0).
    d0 = lx_ref[...] - mux_ref[...]                                          # (TB, M)
    d1 = ly_ref[...] - muy_ref[...]
    d2 = lz_ref[...] - muz_ref[...]
    sq = d0 * d0 + d1 * d1 + d2 * d2                                         # (TB, M)
    dens = coeff_ref[...] * jnp.exp(nhk_ref[...] * sq)                       # (TB, M)

    probs_ref[...] = 1e-9 + jnp.sum(dens * mw, axis=1, keepdims=True)        # (TB, 1)


def mvmf_forward(labels_3d, features, weight, bias, mus, kappas,
                 *, prekappa0=PREKAPPA0, tb=512):
    """labels_3d: (B, 3) unit vectors; features: (B, D); weight: (D, M).
    Returns (mixture_weights (B, M) f32, probs (B,) f32)."""
    B, D = features.shape
    M = weight.shape[1]

    # ---- parameter / label preprocessing (plain JAX, tiny, once per call) ----
    mus3d = latlon_to_cart(mus[0, :], mus[1, :]).astype(jnp.float32)         # (M, 3)
    mux = mus3d[:, 0].reshape(1, M)
    muy = mus3d[:, 1].reshape(1, M)
    muz = mus3d[:, 2].reshape(1, M)
    kappas_eff = jnp.exp(kappas.astype(jnp.float32) + prekappa0).reshape(1, M)
    # exp(-2*kappa) underflows to 0 for kappa ~ exp(16); formula kept general.
    coeff = kappas_eff / (2.0 * math.pi * (1.0 - jnp.exp(-2.0 * kappas_eff)))
    neg_half_kappa = -0.5 * kappas_eff

    labels = labels_3d.astype(jnp.float32)
    lx = labels[:, 0:1]                                                      # (B, 1)
    ly = labels[:, 1:2]
    lz = labels[:, 2:3]

    # ---- batch tiling: large tiles, >= 2 grid steps when possible (v7x megacore),
    # ragged last tile handled by Pallas boundary masking (no padded copies). ----
    assert tb % 8 == 0
    TB = min(tb, _round_up(B, 8))
    if B > 8:
        TB = min(TB, _round_up((B + 1) // 2, 8))
    G = pl.cdiv(B, TB)

    cost = pl.CostEstimate(
        flops=2 * B * D * M + 12 * B * M,
        transcendentals=2 * B * M,
        bytes_accessed=(B * D * 4 + 3 * B * 4          # features + label columns in
                        + B * M * 4 + B * 4            # mixture_weights + probs out
                        + D * M * 2 + 5 * M * 4),      # resident parameters
    )

    mw, probs = pl.pallas_call(
        _mvmf_kernel,
        grid=(G,),
        out_shape=(
            jax.ShapeDtypeStruct((B, M), jnp.float32),
            jax.ShapeDtypeStruct((B, 1), jnp.float32),
        ),
        in_specs=[
            pl.BlockSpec((TB, D), lambda i: (i, 0)),   # features  (f32, streamed)
            pl.BlockSpec((TB, 1), lambda i: (i, 0)),   # label x   (streamed)
            pl.BlockSpec((TB, 1), lambda i: (i, 0)),   # label y
            pl.BlockSpec((TB, 1), lambda i: (i, 0)),   # label z
            pl.BlockSpec((D, M), lambda i: (0, 0)),    # weight bf16 (resident)
            pl.BlockSpec((1, M), lambda i: (0, 0)),    # bias        (resident)
            pl.BlockSpec((1, M), lambda i: (0, 0)),    # mu_x        (resident)
            pl.BlockSpec((1, M), lambda i: (0, 0)),    # mu_y        (resident)
            pl.BlockSpec((1, M), lambda i: (0, 0)),    # mu_z        (resident)
            pl.BlockSpec((1, M), lambda i: (0, 0)),    # -0.5*kappa  (resident)
            pl.BlockSpec((1, M), lambda i: (0, 0)),    # kappa/(2pi(1-e^-2k)) (resident)
        ],
        out_specs=(
            pl.BlockSpec((TB, M), lambda i: (i, 0)),   # mixture weights
            pl.BlockSpec((TB, 1), lambda i: (i, 0)),   # probs column
        ),
        compiler_params=pltpu.CompilerParams(
            dimension_semantics=("parallel",)),
        cost_estimate=cost,
    )(
        features.astype(jnp.float32),
        lx, ly, lz,
        weight.astype(jnp.bfloat16),
        bias.reshape(1, M).astype(jnp.float32),
        mux, muy, muz,
        neg_half_kappa,
        coeff,
    )
    return mw, probs.reshape(B)


if __name__ == "__main__":
    B, D, M = 32, 256, 128  # batch, feature dim, number of vMF mixtures

    key = jax.random.PRNGKey(0)
    kf, kw, kb, kmlat, kmlon, kllat, kllon = jax.random.split(key, 7)

    # deterministic synthetic parameters (shapes per module __init__)
    features = jax.random.normal(kf, (B, D), jnp.float32)
    weight = jax.random.normal(kw, (D, M), jnp.float32) / math.sqrt(D)  # Linear(D, M)
    bias = 0.01 * jax.random.normal(kb, (M,), jnp.float32)
    mu_lat = jax.random.uniform(kmlat, (M,), minval=-90.0, maxval=90.0)
    mu_lon = jax.random.uniform(kmlon, (M,), minval=-180.0, maxval=180.0)
    mus = jnp.stack([mu_lat, mu_lon], axis=0)                           # (2, M)
    kappas = jnp.zeros((M,), jnp.float32)                               # as in __init__

    # example labels: lat/lon -> 3-D unit vectors (what MVMFModule.forward receives)
    lbl_lat = jax.random.uniform(kllat, (B,), minval=-90.0, maxval=90.0)
    lbl_lon = jax.random.uniform(kllon, (B,), minval=-180.0, maxval=180.0)
    labels_3d = latlon_to_cart(lbl_lat, lbl_lon)                        # (B, 3)

    # default tb=512 shrinks to TB=16 here -> 2 grid steps, exercising the
    # pipelined / megacore-parallel path.
    fwd = jax.jit(mvmf_forward)
    mixture_weights, probs = fwd(labels_3d, features, weight, bias, mus, kappas)
    jax.block_until_ready((mixture_weights, probs))

    assert mixture_weights.shape == (B, M) and probs.shape == (B,)
    assert bool(jnp.all(jnp.isfinite(mixture_weights)))
    assert bool(jnp.allclose(jnp.sum(mixture_weights, axis=1), 1.0, atol=1e-4))
    assert bool(jnp.all(jnp.isfinite(probs))) and bool(jnp.all(probs >= 1e-9))
    print("KERNEL_OK")
</pallas_src>

<mosaic_0001>
module attributes {stable_mosaic.version = 11 : i64} {
  func.func @_mvmf_kernel(%arg0: i32, %arg1: memref<16x256xf32, #tpu.memory_space<vmem>>, %arg2: memref<16x1xf32, #tpu.memory_space<vmem>>, %arg3: memref<16x1xf32, #tpu.memory_space<vmem>>, %arg4: memref<16x1xf32, #tpu.memory_space<vmem>>, %arg5: memref<256x128xbf16, #tpu.memory_space<vmem>>, %arg6: memref<1x128xf32, #tpu.memory_space<vmem>>, %arg7: memref<1x128xf32, #tpu.memory_space<vmem>>, %arg8: memref<1x128xf32, #tpu.memory_space<vmem>>, %arg9: memref<1x128xf32, #tpu.memory_space<vmem>>, %arg10: memref<1x128xf32, #tpu.memory_space<vmem>>, %arg11: memref<1x128xf32, #tpu.memory_space<vmem>>, %arg12: memref<16x128xf32, #tpu.memory_space<vmem>>, %arg13: memref<16x1xf32, #tpu.memory_space<vmem>>) attributes {dimension_semantics = [#tpu.dimension_semantics<parallel>], iteration_bounds = array<i64: 2>, scalar_prefetch = 0 : i64, scratch_operands = 0 : i64, tpu.core_type = #tpu.core_type<tc>, window_params = [{transform_indices = @transform_0, window_bounds = array<i64: 16, 256>}, {transform_indices = @transform_1, window_bounds = array<i64: 16, 1>}, {transform_indices = @transform_2, window_bounds = array<i64: 16, 1>}, {transform_indices = @transform_3, window_bounds = array<i64: 16, 1>}, {pipeline_mode = #tpu.pipeline_mode<synchronous>, transform_indices = @transform_4, window_bounds = array<i64: 256, 128>}, {pipeline_mode = #tpu.pipeline_mode<synchronous>, transform_indices = @transform_5, window_bounds = array<i64: 1, 128>}, {pipeline_mode = #tpu.pipeline_mode<synchronous>, transform_indices = @transform_6, window_bounds = array<i64: 1, 128>}, {pipeline_mode = #tpu.pipeline_mode<synchronous>, transform_indices = @transform_7, window_bounds = array<i64: 1, 128>}, {pipeline_mode = #tpu.pipeline_mode<synchronous>, transform_indices = @transform_8, window_bounds = array<i64: 1, 128>}, {pipeline_mode = #tpu.pipeline_mode<synchronous>, transform_indices = @transform_9, window_bounds = array<i64: 1, 128>}, {pipeline_mode = #tpu.pipeline_mode<synchronous>, transform_indices = @transform_10, window_bounds = array<i64: 1, 128>}, {transform_indices = @transform_11, window_bounds = array<i64: 16, 128>}, {transform_indices = @transform_12, window_bounds = array<i64: 16, 1>}]} {
    %c0 = arith.constant 0 : index
    %c0_0 = arith.constant 0 : index
    %0 = vector.load %arg1[%c0, %c0_0] : memref<16x256xf32, #tpu.memory_space<vmem>>, vector<16x256xf32>
    %1 = arith.truncf %0 : vector<16x256xf32> to vector<16x256xbf16>
    %c0_1 = arith.constant 0 : index
    %c0_2 = arith.constant 0 : index
    %2 = vector.load %arg5[%c0_1, %c0_2] : memref<256x128xbf16, #tpu.memory_space<vmem>>, vector<256x128xbf16>
    %cst = arith.constant dense<0.000000e+00> : vector<16x128xf32>
    %3 = tpu.matmul %1, %2, %cst {dimension_numbers = #tpu.dot_dimension_numbers<[1], [0], [0], [1], [0, 0, 1, 1], [], []>} : vector<16x256xbf16>, vector<256x128xbf16>, vector<16x128xf32> -> vector<16x128xf32>
    %c0_3 = arith.constant 0 : index
    %c0_4 = arith.constant 0 : index
    %4 = vector.load %arg6[%c0_3, %c0_4] : memref<1x128xf32, #tpu.memory_space<vmem>>, vector<1x128xf32>
    %5 = vector.broadcast %4 : vector<1x128xf32> to vector<16x128xf32>
    %6 = arith.addf %3, %5 : vector<16x128xf32>
    %cst_5 = arith.constant dense<0xFF800000> : vector<16xf32>
    %7 = vector.multi_reduction <maximumf>, %6, %cst_5 [1] : vector<16x128xf32> to vector<16xf32>
    %8 = vector.shape_cast %7 : vector<16xf32> to vector<16x1xf32>
    %9 = vector.broadcast %8 : vector<16x1xf32> to vector<16x128xf32>
    %10 = arith.subf %6, %9 : vector<16x128xf32>
    %11 = math.exp %10 : vector<16x128xf32>
    %cst_6 = arith.constant dense<0.000000e+00> : vector<16xf32>
    %12 = vector.multi_reduction <add>, %11, %cst_6 [1] : vector<16x128xf32> to vector<16xf32>
    %13 = vector.shape_cast %12 : vector<16xf32> to vector<16x1xf32>
    %14 = tpu.reciprocal %13 : vector<16x1xf32> -> vector<16x1xf32>
    %15 = vector.broadcast %14 : vector<16x1xf32> to vector<16x128xf32>
    %16 = arith.mulf %11, %15 : vector<16x128xf32>
    %c0_7 = arith.constant 0 : index
    %c0_8 = arith.constant 0 : index
    %17 = vector.load %arg12[%c0_7, %c0_8] : memref<16x128xf32, #tpu.memory_space<vmem>>, vector<16x128xf32>
    tpu.vector_store %arg12[%c0_7, %c0_8], %16 {strides = array<i32>} : memref<16x128xf32, #tpu.memory_space<vmem>>, vector<16x128xf32>,
    %c0_9 = arith.constant 0 : index
    %c0_10 = arith.constant 0 : index
    %18 = vector.load %arg2[%c0_9, %c0_10] : memref<16x1xf32, #tpu.memory_space<vmem>>, vector<16x1xf32>
    %c0_11 = arith.constant 0 : index
    %c0_12 = arith.constant 0 : index
    %19 = vector.load %arg7[%c0_11, %c0_12] : memref<1x128xf32, #tpu.memory_space<vmem>>, vector<1x128xf32>
    %20 = vector.broadcast %18 : vector<16x1xf32> to vector<16x128xf32>
    %21 = vector.broadcast %19 : vector<1x128xf32> to vector<16x128xf32>
    %22 = arith.subf %20, %21 : vector<16x128xf32>
    %c0_13 = arith.constant 0 : index
    %c0_14 = arith.constant 0 : index
    %23 = vector.load %arg3[%c0_13, %c0_14] : memref<16x1xf32, #tpu.memory_space<vmem>>, vector<16x1xf32>
    %c0_15 = arith.constant 0 : index
    %c0_16 = arith.constant 0 : index
    %24 = vector.load %arg8[%c0_15, %c0_16] : memref<1x128xf32, #tpu.memory_space<vmem>>, vector<1x128xf32>
    %25 = vector.broadcast %23 : vector<16x1xf32> to vector<16x128xf32>
    %26 = vector.broadcast %24 : vector<1x128xf32> to vector<16x128xf32>
    %27 = arith.subf %25, %26 : vector<16x128xf32>
    %c0_17 = arith.constant 0 : index
    %c0_18 = arith.constant 0 : index
    %28 = vector.load %arg4[%c0_17, %c0_18] : memref<16x1xf32, #tpu.memory_space<vmem>>, vector<16x1xf32>
    %c0_19 = arith.constant 0 : index
    %c0_20 = arith.constant 0 : index
    %29 = vector.load %arg9[%c0_19, %c0_20] : memref<1x128xf32, #tpu.memory_space<vmem>>, vector<1x128xf32>
    %30 = vector.broadcast %28 : vector<16x1xf32> to vector<16x128xf32>
    %31 = vector.broadcast %29 : vector<1x128xf32> to vector<16x128xf32>
    %32 = arith.subf %30, %31 : vector<16x128xf32>
    %33 = arith.mulf %22, %22 : vector<16x128xf32>
    %34 = arith.mulf %27, %27 : vector<16x128xf32>
    %35 = arith.addf %33, %34 : vector<16x128xf32>
    %36 = arith.mulf %32, %32 : vector<16x128xf32>
    %37 = arith.addf %35, %36 : vector<16x128xf32>
    %c0_21 = arith.constant 0 : index
    %c0_22 = arith.constant 0 : index
    %38 = vector.load %arg11[%c0_21, %c0_22] : memref<1x128xf32, #tpu.memory_space<vmem>>, vector<1x128xf32>
    %c0_23 = arith.constant 0 : index
    %c0_24 = arith.constant 0 : index
    %39 = vector.load %arg10[%c0_23, %c0_24] : memref<1x128xf32, #tpu.memory_space<vmem>>, vector<1x128xf32>
    %40 = vector.broadcast %39 : vector<1x128xf32> to vector<16x128xf32>
    %41 = arith.mulf %40, %37 : vector<16x128xf32>
    %42 = math.exp %41 : vector<16x128xf32>
    %43 = vector.broadcast %38 : vector<1x128xf32> to vector<16x128xf32>
    %44 = arith.mulf %43, %42 : vector<16x128xf32>
    %45 = arith.mulf %44, %16 : vector<16x128xf32>
    %cst_25 = arith.constant dense<0.000000e+00> : vector<16xf32>
    %46 = vector.multi_reduction <add>, %45, %cst_25 [1] : vector<16x128xf32> to vector<16xf32>
    %47 = vector.shape_cast %46 : vector<16xf32> to vector<16x1xf32>
    %cst_26 = arith.constant 9.99999971E-10 : f32
    %48 = vector.broadcast %cst_26 : f32 to vector<16x1xf32>
    %49 = arith.addf %48, %47 : vector<16x1xf32>
    %c0_27 = arith.constant 0 : index
    %c0_28 = arith.constant 0 : index
    %50 = vector.load %arg13[%c0_27, %c0_28] : memref<16x1xf32, #tpu.memory_space<vmem>>, vector<16x1xf32>
    tpu.vector_store %arg13[%c0_27, %c0_28], %49 {strides = array<i32>} : memref<16x1xf32, #tpu.memory_space<vmem>>, vector<16x1xf32>,
    return
  }
  func.func @transform_0(%arg0: i32) -> (i32, i32) {
    %c0_i32 = arith.constant 0 : i32
    %c0_i32_0 = arith.constant 0 : i32
    return %arg0, %c0_i32 : i32, i32
  }
  func.func @transform_1(%arg0: i32) -> (i32, i32) {
    %c0_i32 = arith.constant 0 : i32
    %c0_i32_0 = arith.constant 0 : i32
    return %arg0, %c0_i32 : i32, i32
  }
  func.func @transform_2(%arg0: i32) -> (i32, i32) {
    %c0_i32 = arith.constant 0 : i32
    %c0_i32_0 = arith.constant 0 : i32
    return %arg0, %c0_i32 : i32, i32
  }
  func.func @transform_3(%arg0: i32) -> (i32, i32) {
    %c0_i32 = arith.constant 0 : i32
    %c0_i32_0 = arith.constant 0 : i32
    return %arg0, %c0_i32 : i32, i32
  }
  func.func @transform_4(%arg0: i32) -> (i32, i32) {
    %c0_i32 = arith.constant 0 : i32
    %c0_i32_0 = arith.constant 0 : i32
    %c0_i32_1 = arith.constant 0 : i32
    return %c0_i32, %c0_i32_0 : i32, i32
  }
  func.func @transform_5(%arg0: i32) -> (i32, i32) {
    %c0_i32 = arith.constant 0 : i32
    %c0_i32_0 = arith.constant 0 : i32
    %c0_i32_1 = arith.constant 0 : i32
    return %c0_i32, %c0_i32_0 : i32, i32
  }
  func.func @transform_6(%arg0: i32) -> (i32, i32) {
    %c0_i32 = arith.constant 0 : i32
    %c0_i32_0 = arith.constant 0 : i32
    %c0_i32_1 = arith.constant 0 : i32
    return %c0_i32, %c0_i32_0 : i32, i32
  }
  func.func @transform_7(%arg0: i32) -> (i32, i32) {
    %c0_i32 = arith.constant 0 : i32
    %c0_i32_0 = arith.constant 0 : i32
    %c0_i32_1 = arith.constant 0 : i32
    return %c0_i32, %c0_i32_0 : i32, i32
  }
  func.func @transform_8(%arg0: i32) -> (i32, i32) {
    %c0_i32 = arith.constant 0 : i32
    %c0_i32_0 = arith.constant 0 : i32
    %c0_i32_1 = arith.constant 0 : i32
    return %c0_i32, %c0_i32_0 : i32, i32
  }
  func.func @transform_9(%arg0: i32) -> (i32, i32) {
    %c0_i32 = arith.constant 0 : i32
    %c0_i32_0 = arith.constant 0 : i32
    %c0_i32_1 = arith.constant 0 : i32
    return %c0_i32, %c0_i32_0 : i32, i32
  }
  func.func @transform_10(%arg0: i32) -> (i32, i32) {
    %c0_i32 = arith.constant 0 : i32
    %c0_i32_0 = arith.constant 0 : i32
    %c0_i32_1 = arith.constant 0 : i32
    return %c0_i32, %c0_i32_0 : i32, i32
  }
  func.func @transform_11(%arg0: i32) -> (i32, i32) {
    %c0_i32 = arith.constant 0 : i32
    %c0_i32_0 = arith.constant 0 : i32
    return %arg0, %c0_i32 : i32, i32
  }
  func.func @transform_12(%arg0: i32) -> (i32, i32) {
    %c0_i32 = arith.constant 0 : i32
    %c0_i32_0 = arith.constant 0 : i32
    return %arg0, %c0_i32 : i32, i32
  }
}

</mosaic_0001>

<llo_original>
// kernel: mvmf_forward.1
$region0: #{mvmf_forward.1}
  #allocation0 [shape = 'u32[]', space=smem, size = 0x4, offset = 0x4, fixed_abs, tag = 'smem constant byte address 0x4 - core index']
  #allocation1 [shape = 'u32[144,128]{1,0:T(1,128)}', space=vmem, size = 0x12000, scoped, tag = 'internal scratch']
  %s0 = inlined_call_operand.vmem [shape: f32[32,256], index: 0, kind: input, shape index: {}]
  %s1 = inlined_call_operand.vmem [shape: f32[32,1], index: 1, kind: input, shape index: {}]
  %s2 = inlined_call_operand.vmem [shape: f32[32,1], index: 2, kind: input, shape index: {}]
  %s3 = inlined_call_operand.vmem [shape: f32[32,1], index: 3, kind: input, shape index: {}]
  %s4 = inlined_call_operand.vmem [shape: bf16[256,128], index: 4, kind: input, shape index: {}]
  %s5 = inlined_call_operand.vmem [shape: f32[1,128], index: 5, kind: input, shape index: {}]
  %s6 = inlined_call_operand.vmem [shape: f32[1,128], index: 6, kind: input, shape index: {}]
  %s7 = inlined_call_operand.vmem [shape: f32[1,128], index: 7, kind: input, shape index: {}]
  %s8 = inlined_call_operand.vmem [shape: f32[1,128], index: 8, kind: input, shape index: {}]
  %s9 = inlined_call_operand.vmem [shape: f32[1,128], index: 9, kind: input, shape index: {}]
  %s10 = inlined_call_operand.vmem [shape: f32[1,128], index: 10, kind: input, shape index: {}]
  %s11 = inlined_call_operand.hbm [shape: f32[32,128], index: 11, kind: output, shape index: {0}]
  %s12 = inlined_call_operand.vmem [shape: f32[32,1], index: 12, kind: output, shape index: {1}]
  %13 = xla_tuple %s11, %s12
  %s14 = sld [smem:[#allocation0]]
  $region85: #{mvmf_forward.1} parent=0
    _
  %s16 = ssub.s32 1, %s14
  %s17 = scalar_select 0, %s16, %s14
  $region1: #{mvmf_forward.1} parent=0
    #allocation2 [shape = 'u8[16384]{0}', space=vmem, size = 0x4000, scoped, tag = 'output window, operand 0']
    #allocation3 [shape = 's32[2]{0}', space=sflag, size = 0x8, scoped, tag = 'scoped memory for mvmf_forward.1']
    %18 = vsyncpa [#allocation3], 0
    %s19 = scalar_lea.sflag [#allocation3], 1
    %20 = vsyncpa %s19, 0
    loop: start=0, step=1, limit=4
    $region2: #{mvmf_forward.1} parent=1 // loop_pre_header
      _
    $region3: #{mvmf_forward.1} parent=1 // loop_header
      %s22 = sphi 0, %s26
      %p23 = scmp.ge.s32.totalorder %s22, 4
      %s32 = sphi 0, %s34
      %s35 = sphi 0, %s32
      %s36 = sphi 0, %s35
      %s52 = sphi 0, %s36
      %s58 = sphi 0, %s60
      %s61 = sphi 0, %s58
      %s62 = sphi 0, %s61
      %s78 = sphi 0, %s62
      %s84 = sphi 0, %s86
      %s87 = sphi 0, %s84
      %s88 = sphi 0, %s87
      %s104 = sphi 0, %s88
      %s110 = sphi 0, %s112
      %s113 = sphi 0, %s110
      %s114 = sphi 0, %s113
      %s130 = sphi 0, %s114
      %s134 = sphi 0, %s134
      %s136 = sphi 0, %s134
      %s137 = sphi 0, %s136
      %s151 = sphi 0, %s137
      %s155 = sphi 0, %s155
      %s157 = sphi 0, %s155
      %s158 = sphi 0, %s157
      %s172 = sphi 0, %s158
      %s176 = sphi 0, %s176
      %s178 = sphi 0, %s176
      %s179 = sphi 0, %s178
      %s193 = sphi 0, %s179
      %s197 = sphi 0, %s197
      %s199 = sphi 0, %s197
      %s200 = sphi 0, %s199
      %s214 = sphi 0, %s200
      %s218 = sphi 0, %s218
      %s220 = sphi 0, %s218
      %s221 = sphi 0, %s220
      %s235 = sphi 0, %s221
      %s239 = sphi 0, %s239
      %s241 = sphi 0, %s239
      %s242 = sphi 0, %s241
      %s256 = sphi 0, %s242
      %s260 = sphi 0, %s260
      %s262 = sphi 0, %s260
      %s263 = sphi 0, %s262
      %s277 = sphi 0, %s263
      %s283 = sphi 0, %s285
      %s286 = sphi 0, %s283
      %s287 = sphi 0, %s286
      %s303 = sphi 0, %s287
      %s309 = sphi 0, %s311
      %s312 = sphi 0, %s309
      %s313 = sphi 0, %s312
      %s329 = sphi 0, %s313
    $region4: #{mvmf_forward.1} parent=1 // loop_header_branch
      %25 = sbr.rel (%p23) target = $region8
    $region5: #{mvmf_forward.1} parent=1 // loop_body
      %s27 = ssub.s32 %s22, 1
      %s28 = ssub.s32 %s22, 2
      %s29 = sadd.s32 %s22, 1
      %s30 = ssub.s32 %s22, %s29
      %p31 = scmp.eq.s32.totalorder %s30, 0
      %s33 = sadd.s32 %s32, 1
      %s34 = scalar_select %p31, %s32, %s33
      %p37 = pneg %p31
      %p38 = scmp.eq.s32.totalorder %s22, 1
      %p39 = por %p37, %p38
      %p40 = scmp.ne.s32.totalorder %s32, %s35
      %p41 = scmp.eq.s32.totalorder %s22, 0
      %p42 = por %p40, %p41
      %p43 = scmp.ne.s32.totalorder %s32, %s35
      %p44 = scmp.eq.s32.totalorder %s27, 1
      %p45 = por %p43, %p44
      %p46 = scmp.ne.s32.totalorder %s35, %s36
      %p47 = scmp.eq.s32.totalorder %s27, 0
      %p48 = por %p46, %p47
      %p49 = scmp.ne.s32.totalorder %s35, %s36
      %p50 = scmp.eq.s32.totalorder %s28, 1
      %p51 = por %p49, %p50
      %p53 = scmp.ne.s32.totalorder %s36, %s52
      %p54 = scmp.eq.s32.totalorder %s28, 0
      %p55 = por %p53, %p54
      %s56 = ssub.s32 %s22, %s29
      %p57 = scmp.eq.s32.totalorder %s56, 0
      %s59 = sadd.s32 %s58, 1
      %s60 = scalar_select %p57, %s58, %s59
      %p63 = pneg %p57
      %p64 = scmp.eq.s32.totalorder %s22, 1
      %p65 = por %p63, %p64
      %p66 = scmp.ne.s32.totalorder %s58, %s61
      %p67 = scmp.eq.s32.totalorder %s22, 0
      %p68 = por %p66, %p67
      %p69 = scmp.ne.s32.totalorder %s58, %s61
      %p70 = scmp.eq.s32.totalorder %s27, 1
      %p71 = por %p69, %p70
      %p72 = scmp.ne.s32.totalorder %s61, %s62
      %p73 = scmp.eq.s32.totalorder %s27, 0
      %p74 = por %p72, %p73
      %p75 = scmp.ne.s32.totalorder %s61, %s62
      %p76 = scmp.eq.s32.totalorder %s28, 1
      %p77 = por %p75, %p76
      %p79 = scmp.ne.s32.totalorder %s62, %s78
      %p80 = scmp.eq.s32.totalorder %s28, 0
      %p81 = por %p79, %p80
      %s82 = ssub.s32 %s22, %s29
      %p83 = scmp.eq.s32.totalorder %s82, 0
      %s85 = sadd.s32 %s84, 1
      %s86 = scalar_select %p83, %s84, %s85
      %p89 = pneg %p83
      %p90 = scmp.eq.s32.totalorder %s22, 1
      %p91 = por %p89, %p90
      %p92 = scmp.ne.s32.totalorder %s84, %s87
      %p93 = scmp.eq.s32.totalorder %s22, 0
      %p94 = por %p92, %p93
      %p95 = scmp.ne.s32.totalorder %s84, %s87
      %p96 = scmp.eq.s32.totalorder %s27, 1
      %p97 = por %p95, %p96
      %p98 = scmp.ne.s32.totalorder %s87, %s88
      %p99 = scmp.eq.s32.totalorder %s27, 0
      %p100 = por %p98, %p99
      %p101 = scmp.ne.s32.totalorder %s87, %s88
      %p102 = scmp.eq.s32.totalorder %s28, 1
      %p103 = por %p101, %p102
      %p105 = scmp.ne.s32.totalorder %s88, %s104
      %p106 = scmp.eq.s32.totalorder %s28, 0
      %p107 = por %p105, %p106
      %s108 = ssub.s32 %s22, %s29
      %p109 = scmp.eq.s32.totalorder %s108, 0
      %s111 = sadd.s32 %s110, 1
      %s112 = scalar_select %p109, %s110, %s111
      %p115 = pneg %p109
      %p116 = scmp.eq.s32.totalorder %s22, 1
      %p117 = por %p115, %p116
      %p118 = scmp.ne.s32.totalorder %s110, %s113
      %p119 = scmp.eq.s32.totalorder %s22, 0
      %p120 = por %p118, %p119
      %p121 = scmp.ne.s32.totalorder %s110, %s113
      %p122 = scmp.eq.s32.totalorder %s27, 1
      %p123 = por %p121, %p122
      %p124 = scmp.ne.s32.totalorder %s113, %s114
      %p125 = scmp.eq.s32.totalorder %s27, 0
      %p126 = por %p124, %p125
      %p127 = scmp.ne.s32.totalorder %s113, %s114
      %p128 = scmp.eq.s32.totalorder %s28, 1
      %p129 = por %p127, %p128
      %p131 = scmp.ne.s32.totalorder %s114, %s130
      %p132 = scmp.eq.s32.totalorder %s28, 0
      %p133 = por %p131, %p132
      %s135 = sadd.s32 %s134, 1
      %p138 = scmp.eq.s32.totalorder %s22, 1
      %p139 = scmp.ne.s32.totalorder %s134, %s136
      %p140 = scmp.eq.s32.totalorder %s22, 0
      %p141 = por %p139, %p140
      %p142 = scmp.ne.s32.totalorder %s134, %s136
      %p143 = scmp.eq.s32.totalorder %s27, 1
      %p144 = por %p142, %p143
      %p145 = scmp.ne.s32.totalorder %s136, %s137
      %p146 = scmp.eq.s32.totalorder %s27, 0
      %p147 = por %p145, %p146
      %p148 = scmp.ne.s32.totalorder %s136, %s137
      %p149 = scmp.eq.s32.totalorder %s28, 1
      %p150 = por %p148, %p149
      %p152 = scmp.ne.s32.totalorder %s137, %s151
      %p153 = scmp.eq.s32.totalorder %s28, 0
      %p154 = por %p152, %p153
      %s156 = sadd.s32 %s155, 1
      %p159 = scmp.eq.s32.totalorder %s22, 1
      %p160 = scmp.ne.s32.totalorder %s155, %s157
      %p161 = scmp.eq.s32.totalorder %s22, 0
      %p162 = por %p160, %p161
      %p163 = scmp.ne.s32.totalorder %s155, %s157
      %p164 = scmp.eq.s32.totalorder %s27, 1
      %p165 = por %p163, %p164
      %p166 = scmp.ne.s32.totalorder %s157, %s158
      %p167 = scmp.eq.s32.totalorder %s27, 0
      %p168 = por %p166, %p167
      %p169 = scmp.ne.s32.totalorder %s157, %s158
      %p170 = scmp.eq.s32.totalorder %s28, 1
      %p171 = por %p169, %p170
      %p173 = scmp.ne.s32.totalorder %s158, %s172
      %p174 = scmp.eq.s32.totalorder %s28, 0
      %p175 = por %p173, %p174
      %s177 = sadd.s32 %s176, 1
      %p180 = scmp.eq.s32.totalorder %s22, 1
      %p181 = scmp.ne.s32.totalorder %s176, %s178
      %p182 = scmp.eq.s32.totalorder %s22, 0
      %p183 = por %p181, %p182
      %p184 = scmp.ne.s32.totalorder %s176, %s178
      %p185 = scmp.eq.s32.totalorder %s27, 1
      %p186 = por %p184, %p185
      %p187 = scmp.ne.s32.totalorder %s178, %s179
      %p188 = scmp.eq.s32.totalorder %s27, 0
      %p189 = por %p187, %p188
      %p190 = scmp.ne.s32.totalorder %s178, %s179
      %p191 = scmp.eq.s32.totalorder %s28, 1
      %p192 = por %p190, %p191
      %p194 = scmp.ne.s32.totalorder %s179, %s193
      %p195 = scmp.eq.s32.totalorder %s28, 0
      %p196 = por %p194, %p195
      %s198 = sadd.s32 %s197, 1
      %p201 = scmp.eq.s32.totalorder %s22, 1
      %p202 = scmp.ne.s32.totalorder %s197, %s199
      %p203 = scmp.eq.s32.totalorder %s22, 0
      %p204 = por %p202, %p203
      %p205 = scmp.ne.s32.totalorder %s197, %s199
      %p206 = scmp.eq.s32.totalorder %s27, 1
      %p207 = por %p205, %p206
      %p208 = scmp.ne.s32.totalorder %s199, %s200
      %p209 = scmp.eq.s32.totalorder %s27, 0
      %p210 = por %p208, %p209
      %p211 = scmp.ne.s32.totalorder %s199, %s200
      %p212 = scmp.eq.s32.totalorder %s28, 1
      %p213 = por %p211, %p212
      %p215 = scmp.ne.s32.totalorder %s200, %s214
      %p216 = scmp.eq.s32.totalorder %s28, 0
      %p217 = por %p215, %p216
      %s219 = sadd.s32 %s218, 1
      %p222 = scmp.eq.s32.totalorder %s22, 1
      %p223 = scmp.ne.s32.totalorder %s218, %s220
      %p224 = scmp.eq.s32.totalorder %s22, 0
      %p225 = por %p223, %p224
      %p226 = scmp.ne.s32.totalorder %s218, %s220
      %p227 = scmp.eq.s32.totalorder %s27, 1
      %p228 = por %p226, %p227
      %p229 = scmp.ne.s32.totalorder %s220, %s221
      %p230 = scmp.eq.s32.totalorder %s27, 0
      %p231 = por %p229, %p230
      %p232 = scmp.ne.s32.totalorder %s220, %s221
      %p233 = scmp.eq.s32.totalorder %s28, 1
      %p234 = por %p232, %p233
      %p236 = scmp.ne.s32.totalorder %s221, %s235
      %p237 = scmp.eq.s32.totalorder %s28, 0
      %p238 = por %p236, %p237
      %s240 = sadd.s32 %s239, 1
      %p243 = scmp.eq.s32.totalorder %s22, 1
      %p244 = scmp.ne.s32.totalorder %s239, %s241
      %p245 = scmp.eq.s32.totalorder %s22, 0
      %p246 = por %p244, %p245
      %p247 = scmp.ne.s32.totalorder %s239, %s241
      %p248 = scmp.eq.s32.totalorder %s27, 1
      %p249 = por %p247, %p248
      %p250 = scmp.ne.s32.totalorder %s241, %s242
      %p251 = scmp.eq.s32.totalorder %s27, 0
      %p252 = por %p250, %p251
      %p253 = scmp.ne.s32.totalorder %s241, %s242
      %p254 = scmp.eq.s32.totalorder %s28, 1
      %p255 = por %p253, %p254
      %p257 = scmp.ne.s32.totalorder %s242, %s256
      %p258 = scmp.eq.s32.totalorder %s28, 0
      %p259 = por %p257, %p258
      %s261 = sadd.s32 %s260, 1
      %p264 = scmp.eq.s32.totalorder %s22, 1
      %p265 = scmp.ne.s32.totalorder %s260, %s262
      %p266 = scmp.eq.s32.totalorder %s22, 0
      %p267 = por %p265, %p266
      %p268 = scmp.ne.s32.totalorder %s260, %s262
      %p269 = scmp.eq.s32.totalorder %s27, 1
      %p270 = por %p268, %p269
      %p271 = scmp.ne.s32.totalorder %s262, %s263
      %p272 = scmp.eq.s32.totalorder %s27, 0
      %p273 = por %p271, %p272
      %p274 = scmp.ne.s32.totalorder %s262, %s263
      %p275 = scmp.eq.s32.totalorder %s28, 1
      %p276 = por %p274, %p275
      %p278 = scmp.ne.s32.totalorder %s263, %s277
      %p279 = scmp.eq.s32.totalorder %s28, 0
      %p280 = por %p278, %p279
      %s281 = ssub.s32 %s22, %s29
      %p282 = scmp.eq.s32.totalorder %s281, 0
      %s284 = sadd.s32 %s283, 1
      %s285 = scalar_select %p282, %s283, %s284
      %p288 = pneg %p282
      %p289 = scmp.eq.s32.totalorder %s22, 1
      %p290 = por %p288, %p289
      %p291 = scmp.ne.s32.totalorder %s283, %s286
      %p292 = scmp.eq.s32.totalorder %s22, 0
      %p293 = por %p291, %p292
      %p294 = scmp.ne.s32.totalorder %s283, %s286
      %p295 = scmp.eq.s32.totalorder %s27, 1
      %p296 = por %p294, %p295
      %p297 = scmp.ne.s32.totalorder %s286, %s287
      %p298 = scmp.eq.s32.totalorder %s27, 0
      %p299 = por %p297, %p298
      %p300 = scmp.ne.s32.totalorder %s286, %s287
      %p301 = scmp.eq.s32.totalorder %s28, 1
      %p302 = por %p300, %p301
      %p304 = scmp.ne.s32.totalorder %s287, %s303
      %p305 = scmp.eq.s32.totalorder %s28, 0
      %p306 = por %p304, %p305
      %s307 = ssub.s32 %s22, %s29
      %p308 = scmp.eq.s32.totalorder %s307, 0
      %s310 = sadd.s32 %s309, 1
      %s311 = scalar_select %p308, %s309, %s310
      %p314 = pneg %p308
      %p315 = scmp.eq.s32.totalorder %s22, 1
      %p316 = por %p314, %p315
      %p317 = scmp.ne.s32.totalorder %s309, %s312
      %p318 = scmp.eq.s32.totalorder %s22, 0
      %p319 = por %p317, %p318
      %p320 = scmp.ne.s32.totalorder %s309, %s312
      %p321 = scmp.eq.s32.totalorder %s27, 1
      %p322 = por %p320, %p321
      %p323 = scmp.ne.s32.totalorder %s312, %s313
      %p324 = scmp.eq.s32.totalorder %s27, 0
      %p325 = por %p323, %p324
      %p326 = scmp.ne.s32.totalorder %s312, %s313
      %p327 = scmp.eq.s32.totalorder %s28, 1
      %p328 = por %p326, %p327
      %p330 = scmp.ne.s32.totalorder %s313, %s329
      %p331 = scmp.eq.s32.totalorder %s28, 0
      %p332 = por %p330, %p331
      %p333 = scmp.le.s32.totalorder 1, %s22
      %p334 = scmp.lt.s32.totalorder %s22, 3
      %p335 = pnand %p333, %p334
      %p336 = pneg %p335
      // Predicated region
      $region9: #{mvmf_forward.1} parent=5 // pred_check
        _
      $region10: #{mvmf_forward.1} parent=5 // pred_check_branch
        %338 = sbr.rel (%p335) target = $region12
      $region11: #{mvmf_forward.1} parent=5 // pred_region
        %s339 = ssub.s32 %s22, 1
        // Predicated region
        $region13: #{mvmf_forward.1} parent=11 // pred_check
          %p340 = pneg %p147
        $region14: #{mvmf_forward.1} parent=11 // pred_check_branch
          %342 = sbr.rel (%p340) target = $region16
        $region15: #{mvmf_forward.1} parent=11 // pred_region
          _
        $region16: #{mvmf_forward.1} parent=11 // pred_fallthru
          _
        // Predicated region
        $region17: #{mvmf_forward.1} parent=11 // pred_check
          %p343 = pneg %p168
        $region18: #{mvmf_forward.1} parent=11 // pred_check_branch
          %345 = sbr.rel (%p343) target = $region20
        $region19: #{mvmf_forward.1} parent=11 // pred_region
          _
        $region20: #{mvmf_forward.1} parent=11 // pred_fallthru
          _
        // Predicated region
        $region21: #{mvmf_forward.1} parent=11 // pred_check
          %p346 = pneg %p189
        $region22: #{mvmf_forward.1} parent=11 // pred_check_branch
          %348 = sbr.rel (%p346) target = $region24
        $region23: #{mvmf_forward.1} parent=11 // pred_region
          _
        $region24: #{mvmf_forward.1} parent=11 // pred_fallthru
          _
        // Predicated region
        $region25: #{mvmf_forward.1} parent=11 // pred_check
          %p349 = pneg %p210
        $region26: #{mvmf_forward.1} parent=11 // pred_check_branch
          %351 = sbr.rel (%p349) target = $region28
        $region27: #{mvmf_forward.1} parent=11 // pred_region
          _
        $region28: #{mvmf_forward.1} parent=11 // pred_fallthru
          _
        // Predicated region
        $region29: #{mvmf_forward.1} parent=11 // pred_check
          %p352 = pneg %p231
        $region30: #{mvmf_forward.1} parent=11 // pred_check_branch
          %354 = sbr.rel (%p352) target = $region32
        $region31: #{mvmf_forward.1} parent=11 // pred_region
          _
        $region32: #{mvmf_forward.1} parent=11 // pred_fallthru
          _
        // Predicated region
        $region33: #{mvmf_forward.1} parent=11 // pred_check
          %p355 = pneg %p252
        $region34: #{mvmf_forward.1} parent=11 // pred_check_branch
          %357 = sbr.rel (%p355) target = $region36
        $region35: #{mvmf_forward.1} parent=11 // pred_region
          _
        $region36: #{mvmf_forward.1} parent=11 // pred_fallthru
          _
        // Predicated region
        $region37: #{mvmf_forward.1} parent=11 // pred_check
          %p358 = pneg %p273
        $region38: #{mvmf_forward.1} parent=11 // pred_check_branch
          %360 = sbr.rel (%p358) target = $region40
        $region39: #{mvmf_forward.1} parent=11 // pred_region
          _
        $region40: #{mvmf_forward.1} parent=11 // pred_fallthru
          _
      $region12: #{mvmf_forward.1} parent=5 // pred_fallthru
        _
      %p361 = scmp.lt.s32.totalorder %s22, 2
      // Predicated region
      $region41: #{mvmf_forward.1} parent=5 // pred_check
        %p362 = pneg %p361
      $region42: #{mvmf_forward.1} parent=5 // pred_check_branch
        %364 = sbr.rel (%p362) target = $region44
      $region43: #{mvmf_forward.1} parent=5 // pred_region
        // Predicated region
        $region45: #{mvmf_forward.1} parent=43 // pred_check
          %p365 = pneg %p42
        $region46: #{mvmf_forward.1} parent=43 // pred_check_branch
          %367 = sbr.rel (%p365) target = $region48
        $region47: #{mvmf_forward.1} parent=43 // pred_region
          %s368 = smul.u32 2, %s22
          %p369 = scmp.lt.s32.totalorder %s368, 3
          %s370 = scalar_select %p369, %s368, 3
          %s371 = smul.addr %s370, 2
          %s372 = smul.addr %s371, 8
          %s373 = scalar_lea.vmem %s0, %s372
          %s374 = smul.u32 2, %s22
        $region48: #{mvmf_forward.1} parent=43 // pred_fallthru
          _
        // Predicated region
        $region49: #{mvmf_forward.1} parent=43 // pred_check
          %p375 = pneg %p68
        $region50: #{mvmf_forward.1} parent=43 // pred_check_branch
          %377 = sbr.rel (%p375) target = $region52
        $region51: #{mvmf_forward.1} parent=43 // pred_region
          %s378 = smul.u32 2, %s22
          %p379 = scmp.lt.s32.totalorder %s378, 3
          %s380 = scalar_select %p379, %s378, 3
          %s381 = smul.addr %s380, 8
          %s382 = scalar_lea.vmem %s1, %s381
          %s383 = smul.u32 2, %s22
        $region52: #{mvmf_forward.1} parent=43 // pred_fallthru
          _
        // Predicated region
        $region53: #{mvmf_forward.1} parent=43 // pred_check
          %p384 = pneg %p94
        $region54: #{mvmf_forward.1} parent=43 // pred_check_branch
          %386 = sbr.rel (%p384) target = $region56
        $region55: #{mvmf_forward.1} parent=43 // pred_region
          %s387 = smul.u32 2, %s22
          %p388 = scmp.lt.s32.totalorder %s387, 3
          %s389 = scalar_select %p388, %s387, 3
          %s390 = smul.addr %s389, 8
          %s391 = scalar_lea.vmem %s2, %s390
          %s392 = smul.u32 2, %s22
        $region56: #{mvmf_forward.1} parent=43 // pred_fallthru
          _
        // Predicated region
        $region57: #{mvmf_forward.1} parent=43 // pred_check
          %p393 = pneg %p120
        $region58: #{mvmf_forward.1} parent=43 // pred_check_branch
          %395 = sbr.rel (%p393) target = $region60
        $region59: #{mvmf_forward.1} parent=43 // pred_region
          %s396 = smul.u32 2, %s22
          %p397 = scmp.lt.s32.totalorder %s396, 3
          %s398 = scalar_select %p397, %s396, 3
          %s399 = smul.addr %s398, 8
          %s400 = scalar_lea.vmem %s3, %s399
          %s401 = smul.u32 2, %s22
        $region60: #{mvmf_forward.1} parent=43 // pred_fallthru
          _
      $region44: #{mvmf_forward.1} parent=5 // pred_fallthru
        _
      %p402 = scmp.le.s32.totalorder 1, %s22
      %p403 = scmp.lt.s32.totalorder %s22, 3
      %p404 = pnand %p402, %p403
      %p405 = pneg %p404
      // Predicated region
      $region61: #{mvmf_forward.1} parent=5 // pred_check
        _
      $region62: #{mvmf_forward.1} parent=5 // pred_check_branch
        %407 = sbr.rel (%p404) target = $region64
      $region63: #{mvmf_forward.1} parent=5 // pred_region
        %s408 = ssub.s32 %s22, 1
        %s409 = smul.u32 2, %s27
        %p410 = scmp.lt.s32.totalorder %s409, 3
        %s411 = scalar_select %p410, %s409, 3
        %s412 = smul.addr %s411, 2
        %s413 = smul.addr %s412, 8
        %s414 = scalar_lea.vmem %s0, %s413
        %p415 = pneg %p48
        %p416 = pneg %p45
        %s417 = smul.u32 2, %s27
        %p418 = scmp.lt.s32.totalorder %s417, 3
        %s419 = scalar_select %p418, %s417, 3
        %s420 = smul.addr %s419, 8
        %s421 = scalar_lea.vmem %s1, %s420
        %p422 = pneg %p74
        %p423 = pneg %p71
        %s424 = smul.u32 2, %s27
        %p425 = scmp.lt.s32.totalorder %s424, 3
        %s426 = scalar_select %p425, %s424, 3
        %s427 = smul.addr %s426, 8
        %s428 = scalar_lea.vmem %s2, %s427
        %p429 = pneg %p100
        %p430 = pneg %p97
        %s431 = smul.u32 2, %s27
        %p432 = scmp.lt.s32.totalorder %s431, 3
        %s433 = scalar_select %p432, %s431, 3
        %s434 = smul.addr %s433, 8
        %s435 = scalar_lea.vmem %s3, %s434
        %p436 = pneg %p126
        %p437 = pneg %p123
        %p438 = pneg %p147
        %p439 = pneg %p144
        %p440 = pneg %p168
        %p441 = pneg %p165
        %p442 = pneg %p189
        %p443 = pneg %p186
        %p444 = pneg %p210
        %p445 = pneg %p207
        %p446 = pneg %p231
        %p447 = pneg %p228
        %p448 = pneg %p252
        %p449 = pneg %p249
        %p450 = pneg %p273
        %p451 = pneg %p270
        %p452 = pneg %p299
        %p453 = pneg %p296
        %s454 = sand.u32 %s286, 1
        %s455 = scalar_lea.sflag [#allocation3], %s454
        %s456 = sand.u32 %s286, 1
        %s457 = smul.addr %s456, 16
        %s458 = scalar_lea.vmem [#allocation2], %s457
        %p459 = pneg %p325
        %p460 = pneg %p322
        %s461 = smul.u32 2, %s27
        %p462 = scmp.lt.s32.totalorder %s461, 3
        %s463 = scalar_select %p462, %s461, 3
        %s464 = smul.addr %s463, 8
        %s465 = scalar_lea.vmem %s12, %s464
        %s466 = smul.u32 2, %s27
        %p467 = scmp.lt.s32.totalorder %s466, 3
        %s468 = scalar_select %p467, %s466, 3
        %s469 = smul.addr %s468, 2
        %s470 = smul.addr %s469, 8
        %s471 = scalar_lea.vmem %s0, %s470
        %s472 = smul.u32 2, %s27
        %s473 = smul.u32 2, %s27
        %p474 = scmp.lt.s32.totalorder %s473, 3
        %s475 = scalar_select %p474, %s473, 3
        %s476 = smul.addr %s475, 8
        %s477 = scalar_lea.vmem %s1, %s476
        %s478 = smul.u32 2, %s27
        %s479 = smul.u32 2, %s27
        %p480 = scmp.lt.s32.totalorder %s479, 3
        %s481 = scalar_select %p480, %s479, 3
        %s482 = smul.addr %s481, 8
        %s483 = scalar_lea.vmem %s2, %s482
        %s484 = smul.u32 2, %s27
        %s485 = smul.u32 2, %s27
        %p486 = scmp.lt.s32.totalorder %s485, 3
        %s487 = scalar_select %p486, %s485, 3
        %s488 = smul.addr %s487, 8
        %s489 = scalar_lea.vmem %s3, %s488
        %s490 = smul.u32 2, %s27
        %s491 = smul.u32 2, %s27
        %s492 = smul.u32 2, %s27
        %p493 = scmp.lt.s32.totalorder %s492, 3
        %s494 = scalar_select %p493, %s492, 3
        %s495 = smul.addr %s494, 8
        %s496 = scalar_lea.vmem %s12, %s495
        %s497 = smul.u32 2, %s27
        %v499 = vld [vmem:[%s471] sm:$0xff]
        %v500 = vld [vmem:[%s471 + $0x8] sm:$0xff]
        %v501 = vld [vmem:[%s471 + $0x10] sm:$0xff]
        %v502 = vld [vmem:[%s471 + $0x18] sm:$0xff]
        %v503 = vpack.c.bf16 %v501, %v499
        %v504 = vpack.c.bf16 %v502, %v500
        %v505 = vld [vmem:[%s4] sm:$0xf]
        %v506 = vld [vmem:[%s4 + $0x4] sm:$0xf]
        %v507 = vld [vmem:[%s4 + $0x8] sm:$0xf]
        %v508 = vld [vmem:[%s4 + $0xc] sm:$0xf]
        %v509 = vld [vmem:[%s4 + $0x10] sm:$0xf]
        %v510 = vld [vmem:[%s4 + $0x14] sm:$0xf]
        %v511 = vld [vmem:[%s4 + $0x18] sm:$0xf]
        %v512 = vld [vmem:[%s4 + $0x1c] sm:$0xf]
        %v513 = vld [vmem:[%s4 + $0x20] sm:$0xf]
        %v514 = vld [vmem:[%s4 + $0x24] sm:$0xf]
        %v515 = vld [vmem:[%s4 + $0x28] sm:$0xf]
        %v516 = vld [vmem:[%s4 + $0x2c] sm:$0xf]
        %v517 = vld [vmem:[%s4 + $0x30] sm:$0xf]
        %v518 = vld [vmem:[%s4 + $0x34] sm:$0xf]
        %v519 = vld [vmem:[%s4 + $0x38] sm:$0xf]
        %v520 = vld [vmem:[%s4 + $0x3c] sm:$0xf]
        %v521 = vld [vmem:[%s4 + $0x40] sm:$0xf]
        %v522 = vld [vmem:[%s4 + $0x44] sm:$0xf]
        %v523 = vld [vmem:[%s4 + $0x48] sm:$0xf]
        %v524 = vld [vmem:[%s4 + $0x4c] sm:$0xf]
        %v525 = vld [vmem:[%s4 + $0x50] sm:$0xf]
        %v526 = vld [vmem:[%s4 + $0x54] sm:$0xf]
        %v527 = vld [vmem:[%s4 + $0x58] sm:$0xf]
        %v528 = vld [vmem:[%s4 + $0x5c] sm:$0xf]
        %v529 = vld [vmem:[%s4 + $0x60] sm:$0xf]
        %v530 = vld [vmem:[%s4 + $0x64] sm:$0xf]
        %v531 = vld [vmem:[%s4 + $0x68] sm:$0xf]
        %v532 = vld [vmem:[%s4 + $0x6c] sm:$0xf]
        %v533 = vld [vmem:[%s4 + $0x70] sm:$0xf]
        %v534 = vld [vmem:[%s4 + $0x74] sm:$0xf]
        %v535 = vld [vmem:[%s4 + $0x78] sm:$0xf]
        %v536 = vld [vmem:[%s4 + $0x7c] sm:$0xf]
        %v537 = vld [vmem:[%s5] sm:$0x1]
        %v539 = vlaneseq
        %v540 = vshrl.u32 %v539, 7
        %v541 = vsub.s32 0, %v540
        %v542 = vrot.slane %v537, %v541
        %v576 = vunpack.c.l.b16 %v505
        %v577 = vunpack.c.l.b16 %v506
        %v578 = vunpack.c.l.b16 %v507
        %v579 = vunpack.c.l.b16 %v508
        %v580 = vunpack.c.l.b16 %v509
        %v581 = vunpack.c.l.b16 %v510
        %v582 = vunpack.c.l.b16 %v511
        %v583 = vunpack.c.l.b16 %v512
        %v584 = vunpack.c.l.b16 %v513
        %v585 = vunpack.c.l.b16 %v514
        %v586 = vunpack.c.l.b16 %v515
        %v587 = vunpack.c.l.b16 %v516
        %v588 = vunpack.c.l.b16 %v517
        %v589 = vunpack.c.l.b16 %v518
        %v590 = vunpack.c.l.b16 %v519
        %v591 = vunpack.c.l.b16 %v520
        %v592 = vunpack.c.l.b16 %v521
        %v593 = vunpack.c.l.b16 %v522
        %v594 = vunpack.c.l.b16 %v523
        %v595 = vunpack.c.l.b16 %v524
        %v596 = vunpack.c.l.b16 %v525
        %v597 = vunpack.c.l.b16 %v526
        %v598 = vunpack.c.l.b16 %v527
        %v599 = vunpack.c.l.b16 %v528
        %v600 = vunpack.c.l.b16 %v529
        %v601 = vunpack.c.l.b16 %v530
        %v602 = vunpack.c.l.b16 %v531
        %v603 = vunpack.c.l.b16 %v532
        %v604 = vunpack.c.l.b16 %v533
        %v605 = vunpack.c.l.b16 %v534
        %v606 = vunpack.c.l.b16 %v535
        %v607 = vunpack.c.l.b16 %v536
        %v608 = vpack.c.b16 %v577, %v576
        %v609 = vpack.c.b16 %v579, %v578
        %v610 = vpack.c.b16 %v581, %v580
        %v611 = vpack.c.b16 %v583, %v582
        %v612 = vpack.c.b16 %v585, %v584
        %v613 = vpack.c.b16 %v587, %v586
        %v614 = vpack.c.b16 %v589, %v588
        %v615 = vpack.c.b16 %v591, %v590
        %v616 = vpack.c.b16 %v593, %v592
        %v617 = vpack.c.b16 %v595, %v594
        %v618 = vpack.c.b16 %v597, %v596
        %v619 = vpack.c.b16 %v599, %v598
        %v620 = vpack.c.b16 %v601, %v600
        %v621 = vpack.c.b16 %v603, %v602
        %v622 = vpack.c.b16 %v605, %v604
        %v623 = vpack.c.b16 %v607, %v606
        %640 = vmatprep.subr.bf16.mxu0 0
        %641 = vmatpush1.bf16.msra.mxu0 %v615
        %642 = vmatprep.subr.bf16.mxu0 0
        %643 = vmatpush1.bf16.msra.mxu0 %v614
        %644 = vmatprep.subr.bf16.mxu0 0
        %645 = vmatpush1.bf16.msra.mxu0 %v613
        %646 = vmatprep.subr.bf16.mxu0 0
        %647 = vmatpush1.bf16.msra.mxu0 %v612
        %648 = vmatprep.subr.bf16.mxu0 0
        %649 = vmatpush1.bf16.msra.mxu0 %v611
        %650 = vmatprep.subr.bf16.mxu0 0
        %651 = vmatpush1.bf16.msra.mxu0 %v610
        %652 = vmatprep.subr.bf16.mxu0 0
        %653 = vmatpush1.bf16.msra.mxu0 %v609
        %654 = vmatprep.subr.bf16.mxu0 0
        %655 = vmatpush1.bf16.msra.mxu0 %v608
        %656 = vmatprep.subr.bf16.mxu0 0
        %657 = vmatpush2.bf16.msra.mxu0 %v623
        %658 = vmatprep.subr.bf16.mxu0 0
        %659 = vmatpush2.bf16.msra.mxu0 %v622
        %660 = vmatprep.subr.bf16.mxu0 0
        %661 = vmatpush2.bf16.msra.mxu0 %v621
        %662 = vmatprep.subr.bf16.mxu0 0
        %663 = vmatpush2.bf16.msra.mxu0 %v620
        %664 = vmatprep.subr.bf16.mxu0 0
        %665 = vmatpush2.bf16.msra.mxu0 %v619
        %666 = vmatprep.subr.bf16.mxu0 0
        %667 = vmatpush2.bf16.msra.mxu0 %v618
        %668 = vmatprep.subr.bf16.mxu0 0
        %669 = vmatpush2.bf16.msra.mxu0 %v617
        %670 = vmatprep.subr.bf16.mxu0 0
        %671 = vmatpush2.bf16.msra.mxu0 %v616
        %672 = vmatprep.mubr.bf16.mxu0 %v504
        %673 = vmatmul.mubr.bf16.gmra.mxu0 %v503
        %v674 = vpop.f32.mrf.mxu0
        %v675 = vadd.f32 %v542, %v674
        %v676 = vpop.f32.mrf.mxu0
        %v677 = vpop.f32.mrf.mxu0
        %v678 = vadd.f32 %v542, %v677
        %v679 = vpop.f32.mrf.mxu0
        %680 = vdwg.mxu0
        %681 = vmax.xlane.f32.xlu0 %v675
        %v682 = vpop.xlane.xlu0 %681
        %683 = vmax.xlane.f32.xlu0 %v678
        %v684 = vpop.xlane.xlu0 %683
        %v685 = vsub.f32 %v675, %v682
        %v686 = vsub.f32 %v678, %v684
        %v687 = vmul.f32 %v685, 1.442695
        %v688 = vpow.pop %v687
        %v689 = vmul.f32 %v686, 1.442695
        %v690 = vpow.pop %v689
        %691 = vadd.xlane.f32.xlu0 %v688
        %v692 = vpop.xlane.xlu0 %691
        %693 = vadd.xlane.f32.xlu0 %v690
        %v694 = vpop.xlane.xlu0 %693
        %v695 = vrcp.pop %v692
        %v696 = vrcp.pop %v694
        %v697 = vmul.f32 %v688, %v695
        %v698 = vmul.f32 %v690, %v696
        %699 = vst [vmem:[%s458] sm:$0xff] %v697
        %700 = vst [vmem:[%s458 + $0x8] sm:$0xff] %v698
        %v701 = vld [vmem:[%s477] sm:$0xff]
        %v702 = vld [vmem:[%s477 + $0x8] sm:$0xff]
        %v703 = vld [vmem:[%s6] sm:$0x1]
        %705 = vset.pattern.permute.xlu0 0
        %706 = vperm.xlu0 %705, %v701
        %v707 = vpop.permute.xlu0 %706
        %710 = vset.pattern.permute.xlu0 0
        %711 = vperm.xlu0 %710, %v702
        %v712 = vpop.permute.xlu0 %711
        %v715 = vlaneseq
        %v716 = vshrl.u32 %v715, 7
        %v717 = vsub.s32 0, %v716
        %v718 = vrot.slane %v703, %v717
        %v720 = vsub.f32 %v707, %v718
        %v721 = vsub.f32 %v712, %v718
        %v722 = vld [vmem:[%s483] sm:$0xff]
        %v723 = vld [vmem:[%s483 + $0x8] sm:$0xff]
        %v724 = vld [vmem:[%s7] sm:$0x1]
        %726 = vset.pattern.permute.xlu0 0
        %727 = vperm.xlu0 %726, %v722
        %v728 = vpop.permute.xlu0 %727
        %731 = vset.pattern.permute.xlu0 0
        %732 = vperm.xlu0 %731, %v723
        %v733 = vpop.permute.xlu0 %732
        %v736 = vlaneseq
        %v737 = vshrl.u32 %v736, 7
        %v738 = vsub.s32 0, %v737
        %v739 = vrot.slane %v724, %v738
        %v741 = vsub.f32 %v728, %v739
        %v742 = vsub.f32 %v733, %v739
        %v743 = vld [vmem:[%s489] sm:$0xff]
        %v744 = vld [vmem:[%s489 + $0x8] sm:$0xff]
        %v745 = vld [vmem:[%s8] sm:$0x1]
        %747 = vset.pattern.permute.xlu0 0
        %748 = vperm.xlu0 %747, %v743
        %v749 = vpop.permute.xlu0 %748
        %752 = vset.pattern.permute.xlu0 0
        %753 = vperm.xlu0 %752, %v744
        %v754 = vpop.permute.xlu0 %753
        %v757 = vlaneseq
        %v758 = vshrl.u32 %v757, 7
        %v759 = vsub.s32 0, %v758
        %v760 = vrot.slane %v745, %v759
        %v762 = vsub.f32 %v749, %v760
        %v763 = vsub.f32 %v754, %v760
        %v764 = vmul.f32 %v720, %v720
        %v765 = vmul.f32 %v721, %v721
        %v766 = vmul.f32 %v741, %v741
        %v767 = vmul.f32 %v742, %v742
        %v768 = vadd.f32 %v764, %v766
        %v769 = vadd.f32 %v765, %v767
        %v770 = vmul.f32 %v762, %v762
        %v771 = vmul.f32 %v763, %v763
        %v772 = vadd.f32 %v768, %v770
        %v773 = vadd.f32 %v769, %v771
        %v774 = vld [vmem:[%s10] sm:$0x1]
        %v775 = vld [vmem:[%s9] sm:$0x1]
        %v777 = vlaneseq
        %v778 = vshrl.u32 %v777, 7
        %v779 = vsub.s32 0, %v778
        %v780 = vrot.slane %v775, %v779
        %v782 = vmul.f32 %v780, %v772
        %v783 = vmul.f32 %v780, %v773
        %v784 = vmul.f32 %v782, 1.442695
        %v785 = vpow.pop %v784
        %v786 = vmul.f32 %v783, 1.442695
        %v787 = vpow.pop %v786
        %v789 = vlaneseq
        %v790 = vshrl.u32 %v789, 7
        %v791 = vsub.s32 0, %v790
        %v792 = vrot.slane %v774, %v791
        %v794 = vmul.f32 %v792, %v785
        %v795 = vmul.f32 %v792, %v787
        %v796 = vmul.f32 %v794, %v697
        %v797 = vmul.f32 %v795, %v698
        %798 = vadd.xlane.f32.xlu0 %v796
        %v799 = vpop.xlane.xlu0 %798
        %800 = vadd.xlane.f32.xlu0 %v797
        %v801 = vpop.xlane.xlu0 %800
        %v802 = vadd.f32 %v799, 1e-09
        %v803 = vadd.f32 %v801, 1e-09
        %vm804 = vcmask 7168
        %805 = vst.msk [vmem:[%s496] sm:$0xff] %vm804, %v802
        %806 = vst.msk [vmem:[%s496 + $0x8] sm:$0xff] %vm804, %v803
        %s807 = sand.u32 %s286, 1
        %s808 = scalar_lea.sflag [#allocation3], %s807
        %s809 = sand.u32 %s286, 1
        %s810 = smul.addr %s809, 16
        %s811 = scalar_lea.vmem [#allocation2], %s810
        %s812 = smul.u32 2, %s27
        %p813 = scmp.lt.s32.totalorder %s812, 3
        %s814 = scalar_select %p813, %s812, 3
        %s815 = smul.addr %s814, 8
        %s816 = scalar_lea.vmem %s12, %s815
        // Predicated region
        $region65: #{mvmf_forward.1} parent=63 // pred_check
          %p817 = pneg %p296
        $region66: #{mvmf_forward.1} parent=63 // pred_check_branch
          %819 = sbr.rel (%p817) target = $region68
        $region67: #{mvmf_forward.1} parent=63 // pred_region
          %s820 = smul.u32 2, %s27
          %s822 = ssub.s32 256, 256
          %823 = vsyncadd %s808, %s822
          %s824 = smul.addr %s820, 128
          %s825 = scalar_lea.hbm %s11, %s824
          %s826 = sshll.u32 %s811, 4
          %s827 = int_to_ptr.vmem [resolvable:$true] %s826
          %832 = dma.vmem_to_hbm [thread:$0]  %s827, 256, %s825, %s808, 128, 128, 8
        $region68: #{mvmf_forward.1} parent=63 // pred_fallthru
          _
        // Predicated region
        $region69: #{mvmf_forward.1} parent=63 // pred_check
          %p833 = pneg %p322
        $region70: #{mvmf_forward.1} parent=63 // pred_check_branch
          %835 = sbr.rel (%p833) target = $region72
        $region71: #{mvmf_forward.1} parent=63 // pred_region
          %s836 = smul.u32 2, %s27
        $region72: #{mvmf_forward.1} parent=63 // pred_fallthru
          _
      $region64: #{mvmf_forward.1} parent=5 // pred_fallthru
        _
      %p837 = scmp.le.s32.totalorder 2, %s22
      // Predicated region
      $region73: #{mvmf_forward.1} parent=5 // pred_check
        %p838 = pneg %p837
      $region74: #{mvmf_forward.1} parent=5 // pred_check_branch
        %840 = sbr.rel (%p838) target = $region76
      $region75: #{mvmf_forward.1} parent=5 // pred_region
        %s841 = ssub.s32 %s22, 2
        // Predicated region
        $region77: #{mvmf_forward.1} parent=75 // pred_check
          %p842 = pneg %p302
        $region78: #{mvmf_forward.1} parent=75 // pred_check_branch
          %844 = sbr.rel (%p842) target = $region80
        $region79: #{mvmf_forward.1} parent=75 // pred_region
          %s845 = sand.u32 %s287, 1
          %s846 = scalar_lea.sflag [#allocation3], %s845
          %s847 = sand.u32 %s287, 1
          %s848 = smul.addr %s847, 16
          %s849 = scalar_lea.vmem [#allocation2], %s848
          %850 = dma.done %s846, 256
        $region80: #{mvmf_forward.1} parent=75 // pred_fallthru
          _
        // Predicated region
        $region81: #{mvmf_forward.1} parent=75 // pred_check
          %p851 = pneg %p328
        $region82: #{mvmf_forward.1} parent=75 // pred_check_branch
          %853 = sbr.rel (%p851) target = $region84
        $region83: #{mvmf_forward.1} parent=75 // pred_region
          %s854 = smul.u32 2, %s28
          %p855 = scmp.lt.s32.totalorder %s854, 3
          %s856 = scalar_select %p855, %s854, 3
          %s857 = smul.addr %s856, 8
          %s858 = scalar_lea.vmem %s12, %s857
        $region84: #{mvmf_forward.1} parent=75 // pred_fallthru
          _
      $region76: #{mvmf_forward.1} parent=5 // pred_fallthru
        _
    $region6: #{mvmf_forward.1} parent=1 // loop_footer
      %s26 = sadd.s32 1, %s22
    $region7: #{mvmf_forward.1} parent=1 // loop_footer_branch
      %21 = sbr.rel target = $region3
    $region8: #{mvmf_forward.1} parent=1 // loop_exit
      _
    %859 = vsyncpa [#allocation3], 1
    %s860 = scalar_lea.sflag [#allocation3], 1
    %861 = vsyncpa %s860, 1

</llo_original>
